<compile_context>
chip_gen: v6e
topology: v6e:2x2x1
jax: 0.10.0
libtpu: 0.0.40
codegen_flags: <defaults>
</compile_context>

<pallas_src>
import jax
import jax.numpy as jnp
from jax.experimental import pallas as pl
from jax.experimental.pallas import tpu as pltpu


_DEFAULT_VMEM_BUDGET = 12 * 1024 * 1024  # bytes; stays inside v5e's 16 MiB scoped default


def _round_up(a, m):
    return (a + m - 1) // m * m


def _make_gather_kernel(hoist_onehot, precision):
    """Build the gather kernel.

    idx_ref: VMEM (1, T_pad, 1) int32  — source token index for every output slot.
    x_ref:   VMEM (1, N, tile_d)       — D-chunk of the full token sequence, batch b.
    o_ref:   VMEM (1, T_pad, tile_d)   — D-chunk of the kept tokens, batch b.
    onehot_ref (hoist only): VMEM (T_pad, N) scratch, persists across D-chunks.
    """

    def _build_onehot(idx_ref, t_out, n_in, dtype):
        idx = idx_ref[0]                                               # (T_pad, 1)
        token_ids = jax.lax.broadcasted_iota(jnp.int32, (t_out, n_in), 1)
        return (token_ids == idx).astype(dtype)                        # (T_pad, N)

    def _select(onehot, x_slab, out_dtype):
        gathered = jax.lax.dot_general(
            onehot, x_slab,
            dimension_numbers=(((1,), (0,)), ((), ())),
            preferred_element_type=jnp.float32,
            precision=precision)
        return gathered.astype(out_dtype)

    if hoist_onehot:
        def kernel(idx_ref, x_ref, o_ref, onehot_ref):
            @pl.when(pl.program_id(1) == 0)  # first D-chunk of this batch
            def _():
                onehot_ref[...] = _build_onehot(
                    idx_ref, o_ref.shape[1], x_ref.shape[1], onehot_ref.dtype)
            o_ref[0] = _select(onehot_ref[...], x_ref[0], o_ref.dtype)
    else:
        def kernel(idx_ref, x_ref, o_ref):
            onehot = _build_onehot(idx_ref, o_ref.shape[1], x_ref.shape[1], x_ref.dtype)
            o_ref[0] = _select(onehot, x_ref[0], o_ref.dtype)

    return kernel


def _pick_tile_d(D, N, T_pad, itemsize, *, vmem_budget, min_chunks=1):
    """Largest 128-multiple divisor of D whose per-step working set fits the budget."""
    if D % 128 != 0:
        return D  # block last dim must then equal the full dim
    n_pad = _round_up(N, 8)
    # idx block (double-buffered, lane-padded to 128) + one-hot (scratch or in-kernel temp).
    fixed = 2 * T_pad * 128 * 4 + T_pad * _round_up(N, 128) * itemsize
    # x block + out block, double-buffered, per lane column.
    per_col = 2 * (n_pad + T_pad) * itemsize
    max_cols = max(128, ((vmem_budget - fixed) // max(per_col, 1)) // 128 * 128)
    tile = 128
    for cand in range(128, D + 1, 128):
        if D % cand == 0 and cand <= max_cols and D // cand >= min_chunks:
            tile = cand
    return tile


def _gather_tokens(x, src_idx, *, vmem_budget_bytes=_DEFAULT_VMEM_BUDGET):
    """Pallas gather: out[b, k, :] = x[b, src_idx[b, k], :]."""
    B, N, D = x.shape
    T = src_idx.shape[1]
    T_pad = _round_up(T, 8)  # sublane / MXU-M alignment (perf only)
    itemsize = jnp.dtype(x.dtype).itemsize

    idx = src_idx.astype(jnp.int32)
    if T_pad != T:
        idx = jnp.pad(idx, ((0, 0), (0, T_pad - T)))  # padded slots fetch token 0
    idx3 = idx[..., None]                             # (B, T_pad, 1), sublane-major

    min_chunks = 2 if B == 1 else 1                   # keep both v7x cores busy
    tile_d = _pick_tile_d(D, N, T_pad, itemsize,
                          vmem_budget=vmem_budget_bytes, min_chunks=min_chunks)
    num_d = pl.cdiv(D, tile_d)
    grid = (B, num_d)

    # Reuse the one-hot across D-chunks only when the chunk axis can run sequentially
    # per batch on one core (B > 1 keeps a "parallel" axis for megacore sharding).
    hoist = (num_d > 1) and (B > 1)
    dims = ("parallel", "arbitrary") if hoist else ("parallel", "parallel")
    scratch = [pltpu.VMEM((T_pad, N), x.dtype)] if hoist else []

    # HIGHEST only where needed for exactness (f32); bf16 selection is exact at DEFAULT.
    precision = (jax.lax.Precision.HIGHEST if x.dtype == jnp.float32
                 else jax.lax.Precision.DEFAULT)

    cost = pl.CostEstimate(
        flops=2 * B * T_pad * N * D,
        transcendentals=0,
        bytes_accessed=(B * N * D * itemsize + B * T_pad * D * itemsize
                        + B * T_pad * 4),
    )

    out = pl.pallas_call(
        _make_gather_kernel(hoist, precision),
        out_shape=jax.ShapeDtypeStruct((B, T_pad, D), x.dtype),
        grid_spec=pltpu.PrefetchScalarGridSpec(
            num_scalar_prefetch=0,
            grid=grid,
            in_specs=[
                pl.BlockSpec((1, T_pad, 1), lambda b, d: (b, 0, 0)),
                pl.BlockSpec((1, N, tile_d), lambda b, d: (b, 0, d)),
            ],
            out_specs=pl.BlockSpec((1, T_pad, tile_d), lambda b, d: (b, 0, d)),
            scratch_shapes=scratch),
        compiler_params=pltpu.CompilerParams(dimension_semantics=dims),
        cost_estimate=cost,
    )(idx3, x)

    return out[:, :T] if T_pad != T else out


def patch_dropout(x, key, prob, *, exclude_first_token=True, training=True):
    """JAX/Pallas equivalent of PatchDropout.forward.

    x: [B, N, D]. Returns [B, 1 + keep, D] if exclude_first_token else [B, keep, D]
    (matches PyTorch semantics; randomness uses JAX PRNG).
    """
    assert 0 <= prob < 1.0
    if (not training) or prob == 0.0:
        return x

    B, n_total, _ = x.shape
    num_tokens = n_total - 1 if exclude_first_token else n_total
    keep_prob = 1.0 - prob
    num_patches_keep = max(1, int(num_tokens * keep_prob))

    # Random scores + top-k index selection (glue, matches torch.randn().topk()).
    rand = jax.random.normal(key, (B, num_tokens), dtype=jnp.float32)
    _, patch_indices_keep = jax.lax.top_k(rand, num_patches_keep)
    patch_indices_keep = patch_indices_keep.astype(jnp.int32)

    if exclude_first_token:
        # Slot 0 pulls the cls token (index 0 of the full sequence); kept patch indices
        # are offset by +1 because they index x[:, 1:].
        cls_idx = jnp.zeros((B, 1), dtype=jnp.int32)
        src_idx = jnp.concatenate([cls_idx, patch_indices_keep + 1], axis=1)
    else:
        src_idx = patch_indices_keep

    return _gather_tokens(x, src_idx)


def _ref_patch_dropout(x, key, prob, exclude_first_token=True):
    """Pure-JAX reference with identical index selection."""
    B, n_total, _ = x.shape
    num_tokens = n_total - 1 if exclude_first_token else n_total
    keep = max(1, int(num_tokens * (1.0 - prob)))
    rand = jax.random.normal(key, (B, num_tokens), dtype=jnp.float32)
    _, idx = jax.lax.top_k(rand, keep)
    idx = idx.astype(jnp.int32)
    if exclude_first_token:
        src = jnp.concatenate([jnp.zeros((B, 1), jnp.int32), idx + 1], axis=1)
    else:
        src = idx
    return jnp.take_along_axis(x, src[..., None], axis=1)


if __name__ == "__main__":
    key = jax.random.PRNGKey(0)
    k_x, k_drop, k_x2, k_drop2, k_x3, k_idx3, k_x4, k_drop4 = jax.random.split(key, 8)
    prob = 0.5

    # 1) Small f32 shape (D below one lane -> full-D path; T=4 -> padded to 8 + slice).
    B, N, D = 2, 8, 32  # N includes the cls token
    x = jax.random.normal(k_x, (B, N, D), dtype=jnp.float32)
    out = jax.block_until_ready(
        patch_dropout(x, k_drop, prob, exclude_first_token=True, training=True))
    ref = _ref_patch_dropout(x, k_drop, prob, exclude_first_token=True)
    n_keep = max(1, int((N - 1) * (1.0 - prob)))
    assert out.shape == (B, 1 + n_keep, D)
    assert jnp.allclose(out, ref, atol=1e-5, rtol=1e-5), "mismatch (small f32)"

    # 2) bf16 activations -> DEFAULT-precision MXU path (exact one-hot selection).
    B2, N2, D2 = 2, 16, 256
    x2 = jax.random.normal(k_x2, (B2, N2, D2), dtype=jnp.bfloat16)
    out2 = jax.block_until_ready(
        patch_dropout(x2, k_drop2, prob, exclude_first_token=True, training=True))
    ref2 = _ref_patch_dropout(x2, k_drop2, prob, exclude_first_token=True)
    assert out2.shape == ref2.shape
    assert jnp.allclose(out2.astype(jnp.float32), ref2.astype(jnp.float32),
                        atol=1e-6, rtol=1e-6), "mismatch (bf16 path)"

    # 3) Forced-small VMEM budget -> multi-D-chunk grid with hoisted one-hot scratch.
    B3, N3, D3, T3 = 2, 16, 1024, 5
    x3 = jax.random.normal(k_x3, (B3, N3, D3), dtype=jnp.float32)
    src3 = jax.random.randint(k_idx3, (B3, T3), 0, N3, dtype=jnp.int32)
    out3 = jax.block_until_ready(
        _gather_tokens(x3, src3, vmem_budget_bytes=64 * 1024))
    ref3 = jnp.take_along_axis(x3, src3[..., None], axis=1)
    assert out3.shape == (B3, T3, D3)
    assert jnp.allclose(out3, ref3, atol=1e-5, rtol=1e-5), "mismatch (hoisted/tiled path)"

    # 4) B == 1 -> tile shrunk so the grid exposes >= 2 parallel steps (v7x cores).
    B4, N4, D4 = 1, 16, 1024
    x4 = jax.random.normal(k_x4, (B4, N4, D4), dtype=jnp.float32)
    out4 = jax.block_until_ready(
        patch_dropout(x4, k_drop4, prob, exclude_first_token=False, training=True))
    ref4 = _ref_patch_dropout(x4, k_drop4, prob, exclude_first_token=False)
    assert out4.shape == ref4.shape
    assert jnp.allclose(out4, ref4, atol=1e-5, rtol=1e-5), "mismatch (B=1 path)"

    # 5) Eval-mode / prob=0 passthrough checks.
    y = jax.block_until_ready(patch_dropout(x, k_drop, prob, training=False))
    assert jnp.allclose(y, x)
    z = jax.block_until_ready(patch_dropout(x, k_drop, 0.0, training=True))
    assert jnp.allclose(z, x)

    print("KERNEL_OK")
</pallas_src>

<mosaic_0001>
module attributes {stable_mosaic.version = 11 : i64} {
  func.func @kernel(%arg0: i32, %arg1: i32, %arg2: memref<1x8x1xi32, #tpu.memory_space<vmem>>, %arg3: memref<1x8x32xf32, #tpu.memory_space<vmem>>, %arg4: memref<1x8x32xf32, #tpu.memory_space<vmem>>) attributes {dimension_semantics = [#tpu.dimension_semantics<parallel>, #tpu.dimension_semantics<parallel>], iteration_bounds = array<i64: 2, 1>, scalar_prefetch = 0 : i64, scratch_operands = 0 : i64, tpu.core_type = #tpu.core_type<tc>, window_params = [{transform_indices = @transform_0, window_bounds = array<i64: 1, 8, 1>}, {transform_indices = @transform_1, window_bounds = array<i64: 1, 8, 32>}, {transform_indices = @transform_2, window_bounds = array<i64: 1, 8, 32>}]} {
    %c0 = arith.constant 0 : index
    %c0_0 = arith.constant 0 : index
    %c0_1 = arith.constant 0 : index
    %0 = vector.load %arg2[%c0, %c0_0, %c0_1] : memref<1x8x1xi32, #tpu.memory_space<vmem>>, vector<1x8x1xi32>
    %1 = vector.shape_cast %0 : vector<1x8x1xi32> to vector<8x1xi32>
    %2 = tpu.iota {dimensions = array<i32: 1>} : vector<8x8xi32>
    %3 = vector.broadcast %1 : vector<8x1xi32> to vector<8x8xi32>
    %4 = arith.cmpi eq, %2, %3 : vector<8x8xi32>
    %5 = arith.extui %4 : vector<8x8xi1> to vector<8x8xi32>
    %6 = arith.sitofp %5 : vector<8x8xi32> to vector<8x8xf32>
    %c0_2 = arith.constant 0 : index
    %c0_3 = arith.constant 0 : index
    %c0_4 = arith.constant 0 : index
    %7 = vector.load %arg3[%c0_2, %c0_3, %c0_4] : memref<1x8x32xf32, #tpu.memory_space<vmem>>, vector<1x8x32xf32>
    %8 = vector.shape_cast %7 : vector<1x8x32xf32> to vector<8x32xf32>
    %cst = arith.constant dense<0.000000e+00> : vector<8x32xf32>
    %9 = tpu.matmul %6, %8, %cst {dimension_numbers = #tpu.dot_dimension_numbers<[1], [0], [0], [1], [0, 0, 1, 1], [], []>, precision = #tpu.contract_precision<fp32>} : vector<8x8xf32>, vector<8x32xf32>, vector<8x32xf32> -> vector<8x32xf32>
    %c0_5 = arith.constant 0 : index
    %c0_6 = arith.constant 0 : index
    %c0_7 = arith.constant 0 : index
    %10 = vector.load %arg4[%c0_5, %c0_6, %c0_7] : memref<1x8x32xf32, #tpu.memory_space<vmem>>, vector<1x8x32xf32>
    %11 = vector.shape_cast %10 : vector<1x8x32xf32> to vector<8x32xf32>
    %12 = vector.shape_cast %9 : vector<8x32xf32> to vector<1x8x32xf32>
    tpu.vector_store %arg4[%c0_5, %c0_6, %c0_7], %12 {strides = array<i32>} : memref<1x8x32xf32, #tpu.memory_space<vmem>>, vector<1x8x32xf32>,
    return
  }
  func.func @transform_0(%arg0: i32, %arg1: i32) -> (i32, i32, i32) {
    %c0_i32 = arith.constant 0 : i32
    %c0_i32_0 = arith.constant 0 : i32
    %c0_i32_1 = arith.constant 0 : i32
    return %arg0, %c0_i32, %c0_i32_0 : i32, i32, i32
  }
  func.func @transform_1(%arg0: i32, %arg1: i32) -> (i32, i32, i32) {
    %c0_i32 = arith.constant 0 : i32
    %c0_i32_0 = arith.constant 0 : i32
    return %arg0, %c0_i32, %arg1 : i32, i32, i32
  }
  func.func @transform_2(%arg0: i32, %arg1: i32) -> (i32, i32, i32) {
    %c0_i32 = arith.constant 0 : i32
    %c0_i32_0 = arith.constant 0 : i32
    return %arg0, %c0_i32, %arg1 : i32, i32, i32
  }
}

</mosaic_0001>

<llo_original>
// kernel: tpu_custom_call.1
$region0: #{tpu_custom_call.1}
  #allocation0 [shape = 'u32[]', space=smem, size = 0x4, offset = 0x4, fixed_abs, tag = 'smem constant byte address 0x4 - core index']
  #allocation1 [shape = 'u32[144,128]{1,0:T(1,128)}', space=vmem, size = 0x12000, scoped, tag = 'internal scratch']
  %s0 = inlined_call_operand.vmem [shape: s32[2,8,1], index: 0, kind: input, shape index: {}]
  %s1 = inlined_call_operand.vmem [shape: f32[2,8,32], index: 1, kind: input, shape index: {}]
  %s2 = inlined_call_operand.hbm [shape: f32[2,8,32], index: 2, kind: output, shape index: {}]
  %s3 = sld [smem:[#allocation0]]
  $region41: #{tpu_custom_call.1} parent=0
    _
  %s5 = ssub.s32 1, %s3
  %s6 = scalar_select 0, %s5, %s3
  $region1: #{tpu_custom_call.1} parent=0
    #allocation2 [shape = 'u8[8192]{0}', space=vmem, size = 0x2000, scoped, tag = 'output window, operand 0']
    #allocation3 [shape = 's32[2]{0}', space=sflag, size = 0x8, scoped, tag = 'scoped memory for tpu_custom_call.1']
    %7 = vsyncpa [#allocation3], 0
    %s8 = scalar_lea.sflag [#allocation3], 1
    %9 = vsyncpa %s8, 0
    loop: start=0, step=1, limit=4
    $region2: #{tpu_custom_call.1} parent=1 // loop_pre_header
      _
    $region3: #{tpu_custom_call.1} parent=1 // loop_header
      %s11 = sphi 0, %s15
      %p12 = scmp.ge.s32.totalorder %s11, 4
      %s18 = sphi 0, %s30
      %s19 = sphi 0, %s26
      %s20 = sphi 0, %s18
      %s21 = sphi 0, %s19
      %s22 = sphi 0, %s20
      %s23 = sphi 0, %s21
      %s33 = sphi 0, %s35
      %s36 = sphi 0, %s33
      %s37 = sphi 0, %s36
      %s53 = sphi 0, %s37
      %s61 = sphi 0, %s63
      %s64 = sphi 0, %s61
      %s65 = sphi 0, %s64
      %s81 = sphi 0, %s65
      %s89 = sphi 0, %s91
      %s92 = sphi 0, %s89
      %s93 = sphi 0, %s92
      %s109 = sphi 0, %s93
    $region4: #{tpu_custom_call.1} parent=1 // loop_header_branch
      %14 = sbr.rel (%p12) target = $region8
    $region5: #{tpu_custom_call.1} parent=1 // loop_body
      %s16 = ssub.s32 %s11, 1
      %s17 = ssub.s32 %s11, 2
      %s24 = sadd.s32 1, %s19
      %p25 = scmp.ge.s32.totalorder %s24, 1
      %s26 = scalar_select %p25, 0, %s24
      %s27 = sadd.s32 1, %s18
      %s28 = scalar_select %p25, %s27, %s18
      %p29 = scmp.ge.s32.totalorder %s28, 2
      %s30 = scalar_select %p29, 0, %s28
      %s31 = ssub.s32 %s18, %s30
      %p32 = scmp.eq.s32.totalorder %s31, 0
      %s34 = sadd.s32 %s33, 1
      %s35 = scalar_select %p32, %s33, %s34
      %p38 = pneg %p32
      %p39 = scmp.eq.s32.totalorder %s11, 1
      %p40 = por %p38, %p39
      %p41 = scmp.ne.s32.totalorder %s33, %s36
      %p42 = scmp.eq.s32.totalorder %s11, 0
      %p43 = por %p41, %p42
      %p44 = scmp.ne.s32.totalorder %s33, %s36
      %p45 = scmp.eq.s32.totalorder %s16, 1
      %p46 = por %p44, %p45
      %p47 = scmp.ne.s32.totalorder %s36, %s37
      %p48 = scmp.eq.s32.totalorder %s16, 0
      %p49 = por %p47, %p48
      %p50 = scmp.ne.s32.totalorder %s36, %s37
      %p51 = scmp.eq.s32.totalorder %s17, 1
      %p52 = por %p50, %p51
      %p54 = scmp.ne.s32.totalorder %s37, %s53
      %p55 = scmp.eq.s32.totalorder %s17, 0
      %p56 = por %p54, %p55
      %s57 = ssub.s32 %s18, %s30
      %s58 = ssub.s32 %s19, %s26
      %s59 = sor.u32 %s57, %s58
      %p60 = scmp.eq.s32.totalorder %s59, 0
      %s62 = sadd.s32 %s61, 1
      %s63 = scalar_select %p60, %s61, %s62
      %p66 = pneg %p60
      %p67 = scmp.eq.s32.totalorder %s11, 1
      %p68 = por %p66, %p67
      %p69 = scmp.ne.s32.totalorder %s61, %s64
      %p70 = scmp.eq.s32.totalorder %s11, 0
      %p71 = por %p69, %p70
      %p72 = scmp.ne.s32.totalorder %s61, %s64
      %p73 = scmp.eq.s32.totalorder %s16, 1
      %p74 = por %p72, %p73
      %p75 = scmp.ne.s32.totalorder %s64, %s65
      %p76 = scmp.eq.s32.totalorder %s16, 0
      %p77 = por %p75, %p76
      %p78 = scmp.ne.s32.totalorder %s64, %s65
      %p79 = scmp.eq.s32.totalorder %s17, 1
      %p80 = por %p78, %p79
      %p82 = scmp.ne.s32.totalorder %s65, %s81
      %p83 = scmp.eq.s32.totalorder %s17, 0
      %p84 = por %p82, %p83
      %s85 = ssub.s32 %s18, %s30
      %s86 = ssub.s32 %s19, %s26
      %s87 = sor.u32 %s85, %s86
      %p88 = scmp.eq.s32.totalorder %s87, 0
      %s90 = sadd.s32 %s89, 1
      %s91 = scalar_select %p88, %s89, %s90
      %p94 = pneg %p88
      %p95 = scmp.eq.s32.totalorder %s11, 1
      %p96 = por %p94, %p95
      %p97 = scmp.ne.s32.totalorder %s89, %s92
      %p98 = scmp.eq.s32.totalorder %s11, 0
      %p99 = por %p97, %p98
      %p100 = scmp.ne.s32.totalorder %s89, %s92
      %p101 = scmp.eq.s32.totalorder %s16, 1
      %p102 = por %p100, %p101
      %p103 = scmp.ne.s32.totalorder %s92, %s93
      %p104 = scmp.eq.s32.totalorder %s16, 0
      %p105 = por %p103, %p104
      %p106 = scmp.ne.s32.totalorder %s92, %s93
      %p107 = scmp.eq.s32.totalorder %s17, 1
      %p108 = por %p106, %p107
      %p110 = scmp.ne.s32.totalorder %s93, %s109
      %p111 = scmp.eq.s32.totalorder %s17, 0
      %p112 = por %p110, %p111
      %p113 = scmp.le.s32.totalorder 1, %s11
      %p114 = scmp.lt.s32.totalorder %s11, 3
      %p115 = pnand %p113, %p114
      %p116 = pneg %p115
      // Predicated region
      $region9: #{tpu_custom_call.1} parent=5 // pred_check
        _
      $region10: #{tpu_custom_call.1} parent=5 // pred_check_branch
        %118 = sbr.rel (%p115) target = $region12
      $region11: #{tpu_custom_call.1} parent=5 // pred_region
        %s119 = ssub.s32 %s11, 1
      $region12: #{tpu_custom_call.1} parent=5 // pred_fallthru
        _
      %p120 = scmp.lt.s32.totalorder %s11, 2
      // Predicated region
      $region13: #{tpu_custom_call.1} parent=5 // pred_check
        %p121 = pneg %p120
      $region14: #{tpu_custom_call.1} parent=5 // pred_check_branch
        %123 = sbr.rel (%p121) target = $region16
      $region15: #{tpu_custom_call.1} parent=5 // pred_region
        // Predicated region
        $region17: #{tpu_custom_call.1} parent=15 // pred_check
          %p124 = pneg %p43
        $region18: #{tpu_custom_call.1} parent=15 // pred_check_branch
          %126 = sbr.rel (%p124) target = $region20
        $region19: #{tpu_custom_call.1} parent=15 // pred_region
          %p127 = scmp.lt.s32.totalorder %s18, 1
          %s128 = scalar_select %p127, %s18, 1
          %s129 = smul.addr %s128, 8
          %s130 = scalar_lea.vmem %s0, %s129
        $region20: #{tpu_custom_call.1} parent=15 // pred_fallthru
          _
        // Predicated region
        $region21: #{tpu_custom_call.1} parent=15 // pred_check
          %p131 = pneg %p71
        $region22: #{tpu_custom_call.1} parent=15 // pred_check_branch
          %133 = sbr.rel (%p131) target = $region24
        $region23: #{tpu_custom_call.1} parent=15 // pred_region
          %p134 = scmp.lt.s32.totalorder %s18, 1
          %s135 = scalar_select %p134, %s18, 1
          %p136 = scmp.lt.s32.totalorder %s19, 0
          %s137 = scalar_select %p136, %s19, 0
          %s138 = sadd.s32 %s137, %s135
          %s139 = smul.addr %s138, 8
          %s140 = scalar_lea.vmem %s1, %s139
        $region24: #{tpu_custom_call.1} parent=15 // pred_fallthru
          _
      $region16: #{tpu_custom_call.1} parent=5 // pred_fallthru
        _
      %p141 = scmp.le.s32.totalorder 1, %s11
      %p142 = scmp.lt.s32.totalorder %s11, 3
      %p143 = pnand %p141, %p142
      %p144 = pneg %p143
      // Predicated region
      $region25: #{tpu_custom_call.1} parent=5 // pred_check
        _
      $region26: #{tpu_custom_call.1} parent=5 // pred_check_branch
        %146 = sbr.rel (%p143) target = $region28
      $region27: #{tpu_custom_call.1} parent=5 // pred_region
        %s147 = ssub.s32 %s11, 1
        %p148 = scmp.lt.s32.totalorder %s20, 1
        %s149 = scalar_select %p148, %s20, 1
        %s150 = smul.addr %s149, 8
        %s151 = scalar_lea.vmem %s0, %s150
        %p152 = pneg %p49
        %p153 = pneg %p46
        %p154 = scmp.lt.s32.totalorder %s20, 1
        %s155 = scalar_select %p154, %s20, 1
        %p156 = scmp.lt.s32.totalorder %s21, 0
        %s157 = scalar_select %p156, %s21, 0
        %s158 = sadd.s32 %s157, %s155
        %s159 = smul.addr %s158, 8
        %s160 = scalar_lea.vmem %s1, %s159
        %p161 = pneg %p77
        %p162 = pneg %p74
        %p163 = pneg %p105
        %p164 = pneg %p102
        %s165 = sand.u32 %s92, 1
        %s166 = scalar_lea.sflag [#allocation3], %s165
        %s167 = sand.u32 %s92, 1
        %s168 = smul.addr %s167, 8
        %s169 = scalar_lea.vmem [#allocation2], %s168
        %p170 = scmp.lt.s32.totalorder %s20, 1
        %s171 = scalar_select %p170, %s20, 1
        %s172 = smul.addr %s171, 8
        %s173 = scalar_lea.vmem %s0, %s172
        %p174 = scmp.lt.s32.totalorder %s20, 1
        %s175 = scalar_select %p174, %s20, 1
        %p176 = scmp.lt.s32.totalorder %s21, 0
        %s177 = scalar_select %p176, %s21, 0
        %s178 = sadd.s32 %s177, %s175
        %s179 = smul.addr %s178, 8
        %s180 = scalar_lea.vmem %s1, %s179
        %v181 = vld [vmem:[%s173] sm:$0xff]
        %v182 = vlaneseq
        %v183 = vand.u32 %v182, 127
        %184 = vset.pattern.permute.xlu0 0
        %185 = vperm.xlu0 %184, %v181
        %v186 = vpop.permute.xlu0 %185
        %vm187 = vcmp.eq.s32.totalorder %v183, %v186
        %v188 = vsel %vm187, 1, 0
        %v189 = vcvt.s32.f32 %v188
        %v190 = vld [vmem:[%s180] sm:$0xff]
        %vm191 = vcmask 64512
        %v193 = vsel %vm191, %v189, 0
        %195 = vmatprep.subr.mxu0 0.0
        %196 = vmatpush1.msra.mxu0 0.0
        %197 = vmatprep.subr.mxu0 0.0
        %198 = vmatpush1.msra.mxu0 0.0
        %199 = vmatprep.subr.mxu0 0.0
        %200 = vmatpush1.msra.mxu0 0.0
        %201 = vmatprep.subr.mxu0 0.0
        %202 = vmatpush1.msra.mxu0 0.0
        %203 = vmatprep.subr.mxu0 0.0
        %204 = vmatpush1.msra.mxu0 0.0
        %205 = vmatprep.subr.mxu0 0.0
        %206 = vmatpush1.msra.mxu0 0.0
        %207 = vmatprep.subr.mxu0 0.0
        %208 = vmatpush1.msra.mxu0 0.0
        %209 = vmatprep.subr.mxu0 0.0
        %210 = vmatpush1.msra.mxu0 0.0
        %211 = vmatprep.subr.mxu0 0.0
        %212 = vmatpush1.msra.mxu0 0.0
        %213 = vmatprep.subr.mxu0 0.0
        %214 = vmatpush1.msra.mxu0 0.0
        %215 = vmatprep.subr.mxu0 0.0
        %216 = vmatpush1.msra.mxu0 0.0
        %217 = vmatprep.subr.mxu0 0.0
        %218 = vmatpush1.msra.mxu0 0.0
        %219 = vmatprep.subr.mxu0 0.0
        %220 = vmatpush1.msra.mxu0 0.0
        %221 = vmatprep.subr.mxu0 0.0
        %222 = vmatpush1.msra.mxu0 0.0
        %223 = vmatprep.subr.mxu0 0.0
        %224 = vmatpush1.msra.mxu0 0.0
        %225 = vmatprep.subr.mxu0 0.0
        %v226 = vand.u32 %v190, 4294901760
        %227 = vmatpush1.msra.mxu0 %v226
        %228 = vmatprep.subr.mxu0 0.0
        %229 = vmatpush2.msra.mxu0 0.0
        %230 = vmatprep.subr.mxu0 0.0
        %231 = vmatpush2.msra.mxu0 0.0
        %232 = vmatprep.subr.mxu0 0.0
        %233 = vmatpush2.msra.mxu0 0.0
        %234 = vmatprep.subr.mxu0 0.0
        %235 = vmatpush2.msra.mxu0 0.0
        %236 = vmatprep.subr.mxu0 0.0
        %237 = vmatpush2.msra.mxu0 0.0
        %238 = vmatprep.subr.mxu0 0.0
        %239 = vmatpush2.msra.mxu0 0.0
        %240 = vmatprep.subr.mxu0 0.0
        %241 = vmatpush2.msra.mxu0 0.0
        %242 = vmatprep.subr.mxu0 0.0
        %243 = vmatpush2.msra.mxu0 0.0
        %244 = vmatprep.subr.mxu0 0.0
        %245 = vmatpush2.msra.mxu0 0.0
        %246 = vmatprep.subr.mxu0 0.0
        %247 = vmatpush2.msra.mxu0 0.0
        %248 = vmatprep.subr.mxu0 0.0
        %249 = vmatpush2.msra.mxu0 0.0
        %250 = vmatprep.subr.mxu0 0.0
        %251 = vmatpush2.msra.mxu0 0.0
        %252 = vmatprep.subr.mxu0 0.0
        %253 = vmatpush2.msra.mxu0 0.0
        %254 = vmatprep.subr.mxu0 0.0
        %255 = vmatpush2.msra.mxu0 0.0
        %256 = vmatprep.subr.mxu0 0.0
        %257 = vmatpush2.msra.mxu0 0.0
        %258 = vmatprep.subr.mxu0 0.0
        %259 = vmatpush2.msra.mxu0 0.0
        %260 = vmatprep.mubr.f32.mxu0 0.0
        %v261 = vand.u32 %v193, 4294901760
        %v262 = vsub.f32 %v193, %v261
        %v263 = vand.u32 %v262, 4294901760
        %v264 = vsub.f32 %v262, %v263
        %v265 = vand.u32 %v264, 4294901760
        %266 = vmatmul.mubr.f32.gmra.mxu0 %v265
        %v267 = vpop.f32.mrf.mxu0
        %v268 = vadd.f32 0.0, %v267
        %v269 = vpop.f32.mrf.mxu0
        %270 = vdwg.mxu0
        %271 = vmatprep.subr.mxu0 0.0
        %272 = vmatpush1.msra.mxu0 0.0
        %273 = vmatprep.subr.mxu0 0.0
        %274 = vmatpush1.msra.mxu0 0.0
        %275 = vmatprep.subr.mxu0 0.0
        %276 = vmatpush1.msra.mxu0 0.0
        %277 = vmatprep.subr.mxu0 0.0
        %278 = vmatpush1.msra.mxu0 0.0
        %279 = vmatprep.subr.mxu0 0.0
        %280 = vmatpush1.msra.mxu0 0.0
        %281 = vmatprep.subr.mxu0 0.0
        %282 = vmatpush1.msra.mxu0 0.0
        %283 = vmatprep.subr.mxu0 0.0
        %284 = vmatpush1.msra.mxu0 0.0
        %285 = vmatprep.subr.mxu0 0.0
        %286 = vmatpush1.msra.mxu0 0.0
        %287 = vmatprep.subr.mxu0 0.0
        %288 = vmatpush1.msra.mxu0 0.0
        %289 = vmatprep.subr.mxu0 0.0
        %290 = vmatpush1.msra.mxu0 0.0
        %291 = vmatprep.subr.mxu0 0.0
        %292 = vmatpush1.msra.mxu0 0.0
        %293 = vmatprep.subr.mxu0 0.0
        %294 = vmatpush1.msra.mxu0 0.0
        %295 = vmatprep.subr.mxu0 0.0
        %296 = vmatpush1.msra.mxu0 0.0
        %297 = vmatprep.subr.mxu0 0.0
        %298 = vmatpush1.msra.mxu0 0.0
        %299 = vmatprep.subr.mxu0 0.0
        %300 = vmatpush1.msra.mxu0 0.0
        %301 = vmatprep.subr.mxu0 0.0
        %v302 = vand.u32 %v190, 4294901760
        %v303 = vsub.f32 %v190, %v302
        %v304 = vand.u32 %v303, 4294901760
        %v305 = vsub.f32 %v303, %v304
        %v306 = vand.u32 %v305, 4294901760
        %307 = vmatpush1.msra.mxu0 %v306
        %308 = vmatprep.subr.mxu0 0.0
        %309 = vmatpush2.msra.mxu0 0.0
        %310 = vmatprep.subr.mxu0 0.0
        %311 = vmatpush2.msra.mxu0 0.0
        %312 = vmatprep.subr.mxu0 0.0
        %313 = vmatpush2.msra.mxu0 0.0
        %314 = vmatprep.subr.mxu0 0.0
        %315 = vmatpush2.msra.mxu0 0.0
        %316 = vmatprep.subr.mxu0 0.0
        %317 = vmatpush2.msra.mxu0 0.0
        %318 = vmatprep.subr.mxu0 0.0
        %319 = vmatpush2.msra.mxu0 0.0
        %320 = vmatprep.subr.mxu0 0.0
        %321 = vmatpush2.msra.mxu0 0.0
        %322 = vmatprep.subr.mxu0 0.0
        %323 = vmatpush2.msra.mxu0 0.0
        %324 = vmatprep.subr.mxu0 0.0
        %325 = vmatpush2.msra.mxu0 0.0
        %326 = vmatprep.subr.mxu0 0.0
        %327 = vmatpush2.msra.mxu0 0.0
        %328 = vmatprep.subr.mxu0 0.0
        %329 = vmatpush2.msra.mxu0 0.0
        %330 = vmatprep.subr.mxu0 0.0
        %331 = vmatpush2.msra.mxu0 0.0
        %332 = vmatprep.subr.mxu0 0.0
        %333 = vmatpush2.msra.mxu0 0.0
        %334 = vmatprep.subr.mxu0 0.0
        %335 = vmatpush2.msra.mxu0 0.0
        %336 = vmatprep.subr.mxu0 0.0
        %337 = vmatpush2.msra.mxu0 0.0
        %338 = vmatprep.subr.mxu0 0.0
        %339 = vmatpush2.msra.mxu0 0.0
        %340 = vmatprep.mubr.f32.mxu0 0.0
        %v341 = vand.u32 %v193, 4294901760
        %342 = vmatmul.mubr.f32.gmra.mxu0 %v341
        %v343 = vpop.f32.mrf.mxu0
        %v344 = vadd.f32 %v268, %v343
        %v345 = vpop.f32.mrf.mxu0
        %346 = vdwg.mxu0
        %347 = vmatprep.subr.mxu0 0.0
        %348 = vmatpush1.msra.mxu0 0.0
        %349 = vmatprep.subr.mxu0 0.0
        %350 = vmatpush1.msra.mxu0 0.0
        %351 = vmatprep.subr.mxu0 0.0
        %352 = vmatpush1.msra.mxu0 0.0
        %353 = vmatprep.subr.mxu0 0.0
        %354 = vmatpush1.msra.mxu0 0.0
        %355 = vmatprep.subr.mxu0 0.0
        %356 = vmatpush1.msra.mxu0 0.0
        %357 = vmatprep.subr.mxu0 0.0
        %358 = vmatpush1.msra.mxu0 0.0
        %359 = vmatprep.subr.mxu0 0.0
        %360 = vmatpush1.msra.mxu0 0.0
        %361 = vmatprep.subr.mxu0 0.0
        %362 = vmatpush1.msra.mxu0 0.0
        %363 = vmatprep.subr.mxu0 0.0
        %364 = vmatpush1.msra.mxu0 0.0
        %365 = vmatprep.subr.mxu0 0.0
        %366 = vmatpush1.msra.mxu0 0.0
        %367 = vmatprep.subr.mxu0 0.0
        %368 = vmatpush1.msra.mxu0 0.0
        %369 = vmatprep.subr.mxu0 0.0
        %370 = vmatpush1.msra.mxu0 0.0
        %371 = vmatprep.subr.mxu0 0.0
        %372 = vmatpush1.msra.mxu0 0.0
        %373 = vmatprep.subr.mxu0 0.0
        %374 = vmatpush1.msra.mxu0 0.0
        %375 = vmatprep.subr.mxu0 0.0
        %376 = vmatpush1.msra.mxu0 0.0
        %377 = vmatprep.subr.mxu0 0.0
        %v378 = vand.u32 %v190, 4294901760
        %v379 = vsub.f32 %v190, %v378
        %380 = vmatpush1.msra.mxu0 %v379
        %381 = vmatprep.subr.mxu0 0.0
        %382 = vmatpush2.msra.mxu0 0.0
        %383 = vmatprep.subr.mxu0 0.0
        %384 = vmatpush2.msra.mxu0 0.0
        %385 = vmatprep.subr.mxu0 0.0
        %386 = vmatpush2.msra.mxu0 0.0
        %387 = vmatprep.subr.mxu0 0.0
        %388 = vmatpush2.msra.mxu0 0.0
        %389 = vmatprep.subr.mxu0 0.0
        %390 = vmatpush2.msra.mxu0 0.0
        %391 = vmatprep.subr.mxu0 0.0
        %392 = vmatpush2.msra.mxu0 0.0
        %393 = vmatprep.subr.mxu0 0.0
        %394 = vmatpush2.msra.mxu0 0.0
        %395 = vmatprep.subr.mxu0 0.0
        %396 = vmatpush2.msra.mxu0 0.0
        %397 = vmatprep.subr.mxu0 0.0
        %398 = vmatpush2.msra.mxu0 0.0
        %399 = vmatprep.subr.mxu0 0.0
        %400 = vmatpush2.msra.mxu0 0.0
        %401 = vmatprep.subr.mxu0 0.0
        %402 = vmatpush2.msra.mxu0 0.0
        %403 = vmatprep.subr.mxu0 0.0
        %404 = vmatpush2.msra.mxu0 0.0
        %405 = vmatprep.subr.mxu0 0.0
        %406 = vmatpush2.msra.mxu0 0.0
        %407 = vmatprep.subr.mxu0 0.0
        %408 = vmatpush2.msra.mxu0 0.0
        %409 = vmatprep.subr.mxu0 0.0
        %410 = vmatpush2.msra.mxu0 0.0
        %411 = vmatprep.subr.mxu0 0.0
        %412 = vmatpush2.msra.mxu0 0.0
        %413 = vmatprep.mubr.f32.mxu0 0.0
        %v414 = vand.u32 %v193, 4294901760
        %v415 = vsub.f32 %v193, %v414
        %416 = vmatmul.mubr.f32.gmra.mxu0 %v415
        %v417 = vpop.f32.mrf.mxu0
        %v418 = vadd.f32 %v344, %v417
        %v419 = vpop.f32.mrf.mxu0
        %420 = vdwg.mxu0
        %421 = vmatprep.subr.mxu0 0.0
        %422 = vmatpush1.msra.mxu0 0.0
        %423 = vmatprep.subr.mxu0 0.0
        %424 = vmatpush1.msra.mxu0 0.0
        %425 = vmatprep.subr.mxu0 0.0
        %426 = vmatpush1.msra.mxu0 0.0
        %427 = vmatprep.subr.mxu0 0.0
        %428 = vmatpush1.msra.mxu0 0.0
        %429 = vmatprep.subr.mxu0 0.0
        %430 = vmatpush1.msra.mxu0 0.0
        %431 = vmatprep.subr.mxu0 0.0
        %432 = vmatpush1.msra.mxu0 0.0
        %433 = vmatprep.subr.mxu0 0.0
        %434 = vmatpush1.msra.mxu0 0.0
        %435 = vmatprep.subr.mxu0 0.0
        %436 = vmatpush1.msra.mxu0 0.0
        %437 = vmatprep.subr.mxu0 0.0
        %438 = vmatpush1.msra.mxu0 0.0
        %439 = vmatprep.subr.mxu0 0.0
        %440 = vmatpush1.msra.mxu0 0.0
        %441 = vmatprep.subr.mxu0 0.0
        %442 = vmatpush1.msra.mxu0 0.0
        %443 = vmatprep.subr.mxu0 0.0
        %444 = vmatpush1.msra.mxu0 0.0
        %445 = vmatprep.subr.mxu0 0.0
        %446 = vmatpush1.msra.mxu0 0.0
        %447 = vmatprep.subr.mxu0 0.0
        %448 = vmatpush1.msra.mxu0 0.0
        %449 = vmatprep.subr.mxu0 0.0
        %450 = vmatpush1.msra.mxu0 0.0
        %451 = vmatprep.subr.mxu0 0.0
        %v452 = vand.u32 %v190, 4294901760
        %453 = vmatpush1.msra.mxu0 %v452
        %454 = vmatprep.subr.mxu0 0.0
        %455 = vmatpush2.msra.mxu0 0.0
        %456 = vmatprep.subr.mxu0 0.0
        %457 = vmatpush2.msra.mxu0 0.0
        %458 = vmatprep.subr.mxu0 0.0
        %459 = vmatpush2.msra.mxu0 0.0
        %460 = vmatprep.subr.mxu0 0.0
        %461 = vmatpush2.msra.mxu0 0.0
        %462 = vmatprep.subr.mxu0 0.0
        %463 = vmatpush2.msra.mxu0 0.0
        %464 = vmatprep.subr.mxu0 0.0
        %465 = vmatpush2.msra.mxu0 0.0
        %466 = vmatprep.subr.mxu0 0.0
        %467 = vmatpush2.msra.mxu0 0.0
        %468 = vmatprep.subr.mxu0 0.0
        %469 = vmatpush2.msra.mxu0 0.0
        %470 = vmatprep.subr.mxu0 0.0
        %471 = vmatpush2.msra.mxu0 0.0
        %472 = vmatprep.subr.mxu0 0.0
        %473 = vmatpush2.msra.mxu0 0.0
        %474 = vmatprep.subr.mxu0 0.0
        %475 = vmatpush2.msra.mxu0 0.0
        %476 = vmatprep.subr.mxu0 0.0
        %477 = vmatpush2.msra.mxu0 0.0
        %478 = vmatprep.subr.mxu0 0.0
        %479 = vmatpush2.msra.mxu0 0.0
        %480 = vmatprep.subr.mxu0 0.0
        %481 = vmatpush2.msra.mxu0 0.0
        %482 = vmatprep.subr.mxu0 0.0
        %483 = vmatpush2.msra.mxu0 0.0
        %484 = vmatprep.subr.mxu0 0.0
        %485 = vmatpush2.msra.mxu0 0.0
        %486 = vmatprep.mubr.f32.mxu0 0.0
        %v487 = vand.u32 %v193, 4294901760
        %v488 = vsub.f32 %v193, %v487
        %v489 = vand.u32 %v488, 4294901760
        %490 = vmatmul.mubr.f32.gmra.mxu0 %v489
        %v491 = vpop.f32.mrf.mxu0
        %v492 = vadd.f32 %v418, %v491
        %v493 = vpop.f32.mrf.mxu0
        %494 = vdwg.mxu0
        %495 = vmatprep.subr.mxu0 0.0
        %496 = vmatpush1.msra.mxu0 0.0
        %497 = vmatprep.subr.mxu0 0.0
        %498 = vmatpush1.msra.mxu0 0.0
        %499 = vmatprep.subr.mxu0 0.0
        %500 = vmatpush1.msra.mxu0 0.0
        %501 = vmatprep.subr.mxu0 0.0
        %502 = vmatpush1.msra.mxu0 0.0
        %503 = vmatprep.subr.mxu0 0.0
        %504 = vmatpush1.msra.mxu0 0.0
        %505 = vmatprep.subr.mxu0 0.0
        %506 = vmatpush1.msra.mxu0 0.0
        %507 = vmatprep.subr.mxu0 0.0
        %508 = vmatpush1.msra.mxu0 0.0
        %509 = vmatprep.subr.mxu0 0.0
        %510 = vmatpush1.msra.mxu0 0.0
        %511 = vmatprep.subr.mxu0 0.0
        %512 = vmatpush1.msra.mxu0 0.0
        %513 = vmatprep.subr.mxu0 0.0
        %514 = vmatpush1.msra.mxu0 0.0
        %515 = vmatprep.subr.mxu0 0.0
        %516 = vmatpush1.msra.mxu0 0.0
        %517 = vmatprep.subr.mxu0 0.0
        %518 = vmatpush1.msra.mxu0 0.0
        %519 = vmatprep.subr.mxu0 0.0
        %520 = vmatpush1.msra.mxu0 0.0
        %521 = vmatprep.subr.mxu0 0.0
        %522 = vmatpush1.msra.mxu0 0.0
        %523 = vmatprep.subr.mxu0 0.0
        %524 = vmatpush1.msra.mxu0 0.0
        %525 = vmatprep.subr.mxu0 0.0
        %v526 = vand.u32 %v190, 4294901760
        %v527 = vsub.f32 %v190, %v526
        %v528 = vand.u32 %v527, 4294901760
        %529 = vmatpush1.msra.mxu0 %v528
        %530 = vmatprep.subr.mxu0 0.0
        %531 = vmatpush2.msra.mxu0 0.0
        %532 = vmatprep.subr.mxu0 0.0
        %533 = vmatpush2.msra.mxu0 0.0
        %534 = vmatprep.subr.mxu0 0.0
        %535 = vmatpush2.msra.mxu0 0.0
        %536 = vmatprep.subr.mxu0 0.0
        %537 = vmatpush2.msra.mxu0 0.0
        %538 = vmatprep.subr.mxu0 0.0
        %539 = vmatpush2.msra.mxu0 0.0
        %540 = vmatprep.subr.mxu0 0.0
        %541 = vmatpush2.msra.mxu0 0.0
        %542 = vmatprep.subr.mxu0 0.0
        %543 = vmatpush2.msra.mxu0 0.0
        %544 = vmatprep.subr.mxu0 0.0
        %545 = vmatpush2.msra.mxu0 0.0
        %546 = vmatprep.subr.mxu0 0.0
        %547 = vmatpush2.msra.mxu0 0.0
        %548 = vmatprep.subr.mxu0 0.0
        %549 = vmatpush2.msra.mxu0 0.0
        %550 = vmatprep.subr.mxu0 0.0
        %551 = vmatpush2.msra.mxu0 0.0
        %552 = vmatprep.subr.mxu0 0.0
        %553 = vmatpush2.msra.mxu0 0.0
        %554 = vmatprep.subr.mxu0 0.0
        %555 = vmatpush2.msra.mxu0 0.0
        %556 = vmatprep.subr.mxu0 0.0
        %557 = vmatpush2.msra.mxu0 0.0
        %558 = vmatprep.subr.mxu0 0.0
        %559 = vmatpush2.msra.mxu0 0.0
        %560 = vmatprep.subr.mxu0 0.0
        %561 = vmatpush2.msra.mxu0 0.0
        %562 = vmatprep.mubr.f32.mxu0 0.0
        %v563 = vand.u32 %v193, 4294901760
        %564 = vmatmul.mubr.f32.gmra.mxu0 %v563
        %v565 = vpop.f32.mrf.mxu0
        %v566 = vadd.f32 %v492, %v565
        %v567 = vpop.f32.mrf.mxu0
        %568 = vdwg.mxu0
        %569 = vmatprep.subr.mxu0 0.0
        %570 = vmatpush1.msra.mxu0 0.0
        %571 = vmatprep.subr.mxu0 0.0
        %572 = vmatpush1.msra.mxu0 0.0
        %573 = vmatprep.subr.mxu0 0.0
        %574 = vmatpush1.msra.mxu0 0.0
        %575 = vmatprep.subr.mxu0 0.0
        %576 = vmatpush1.msra.mxu0 0.0
        %577 = vmatprep.subr.mxu0 0.0
        %578 = vmatpush1.msra.mxu0 0.0
        %579 = vmatprep.subr.mxu0 0.0
        %580 = vmatpush1.msra.mxu0 0.0
        %581 = vmatprep.subr.mxu0 0.0
        %582 = vmatpush1.msra.mxu0 0.0
        %583 = vmatprep.subr.mxu0 0.0
        %584 = vmatpush1.msra.mxu0 0.0
        %585 = vmatprep.subr.mxu0 0.0
        %586 = vmatpush1.msra.mxu0 0.0
        %587 = vmatprep.subr.mxu0 0.0
        %588 = vmatpush1.msra.mxu0 0.0
        %589 = vmatprep.subr.mxu0 0.0
        %590 = vmatpush1.msra.mxu0 0.0
        %591 = vmatprep.subr.mxu0 0.0
        %592 = vmatpush1.msra.mxu0 0.0
        %593 = vmatprep.subr.mxu0 0.0
        %594 = vmatpush1.msra.mxu0 0.0
        %595 = vmatprep.subr.mxu0 0.0
        %596 = vmatpush1.msra.mxu0 0.0
        %597 = vmatprep.subr.mxu0 0.0
        %598 = vmatpush1.msra.mxu0 0.0
        %599 = vmatprep.subr.mxu0 0.0
        %v600 = vand.u32 %v190, 4294901760
        %601 = vmatpush1.msra.mxu0 %v600
        %602 = vmatprep.subr.mxu0 0.0
        %603 = vmatpush2.msra.mxu0 0.0
        %604 = vmatprep.subr.mxu0 0.0
        %605 = vmatpush2.msra.mxu0 0.0
        %606 = vmatprep.subr.mxu0 0.0
        %607 = vmatpush2.msra.mxu0 0.0
        %608 = vmatprep.subr.mxu0 0.0
        %609 = vmatpush2.msra.mxu0 0.0
        %610 = vmatprep.subr.mxu0 0.0
        %611 = vmatpush2.msra.mxu0 0.0
        %612 = vmatprep.subr.mxu0 0.0
        %613 = vmatpush2.msra.mxu0 0.0
        %614 = vmatprep.subr.mxu0 0.0
        %615 = vmatpush2.msra.mxu0 0.0
        %616 = vmatprep.subr.mxu0 0.0
        %617 = vmatpush2.msra.mxu0 0.0
        %618 = vmatprep.subr.mxu0 0.0
        %619 = vmatpush2.msra.mxu0 0.0
        %620 = vmatprep.subr.mxu0 0.0
        %621 = vmatpush2.msra.mxu0 0.0
        %622 = vmatprep.subr.mxu0 0.0
        %623 = vmatpush2.msra.mxu0 0.0
        %624 = vmatprep.subr.mxu0 0.0
        %625 = vmatpush2.msra.mxu0 0.0
        %626 = vmatprep.subr.mxu0 0.0
        %627 = vmatpush2.msra.mxu0 0.0
        %628 = vmatprep.subr.mxu0 0.0
        %629 = vmatpush2.msra.mxu0 0.0
        %630 = vmatprep.subr.mxu0 0.0
        %631 = vmatpush2.msra.mxu0 0.0
        %632 = vmatprep.subr.mxu0 0.0
        %633 = vmatpush2.msra.mxu0 0.0
        %634 = vmatprep.mubr.f32.mxu0 0.0
        %v635 = vand.u32 %v193, 4294901760
        %636 = vmatmul.mubr.f32.gmra.mxu0 %v635
        %v637 = vpop.f32.mrf.mxu0
        %v638 = vadd.f32 %v566, %v637
        %v639 = vpop.f32.mrf.mxu0
        %640 = vdwg.mxu0
        %vm641 = vcmask 261120
        %642 = vst.msk [vmem:[%s169] sm:$0xff] %vm641, %v638
        %s643 = sand.u32 %s92, 1
        %s644 = scalar_lea.sflag [#allocation3], %s643
        %s645 = sand.u32 %s92, 1
        %s646 = smul.addr %s645, 8
        %s647 = scalar_lea.vmem [#allocation2], %s646
        // Predicated region
        $region29: #{tpu_custom_call.1} parent=27 // pred_check
          %p648 = pneg %p102
        $region30: #{tpu_custom_call.1} parent=27 // pred_check_branch
          %650 = sbr.rel (%p648) target = $region32
        $region31: #{tpu_custom_call.1} parent=27 // pred_region
          %s652 = ssub.s32 128, 128
          %653 = vsyncadd %s644, %s652
          %s654 = sadd.s32 %s21, %s20
          %s655 = smul.addr %s654, 128
          %s656 = scalar_lea.hbm %s2, %s655
          %s658 = sshll.u32 %s647, 4
          %s659 = int_to_ptr.vmem [resolvable:$true] %s658
          %661 = dma.vmem_to_hbm [thread:$0]  %s659, 128, %s656, %s644
        $region32: #{tpu_custom_call.1} parent=27 // pred_fallthru
          _
      $region28: #{tpu_custom_call.1} parent=5 // pred_fallthru
        _
      %p662 = scmp.le.s32.totalorder 2, %s11
      // Predicated region
      $region33: #{tpu_custom_call.1} parent=5 // pred_check
        %p663 = pneg %p662
      $region34: #{tpu_custom_call.1} parent=5 // pred_check_branch
        %665 = sbr.rel (%p663) target = $region36
      $region35: #{tpu_custom_call.1} parent=5 // pred_region
        %s666 = ssub.s32 %s11, 2
        // Predicated region
        $region37: #{tpu_custom_call.1} parent=35 // pred_check
          %p667 = pneg %p108
        $region38: #{tpu_custom_call.1} parent=35 // pred_check_branch
          %669 = sbr.rel (%p667) target = $region40
        $region39: #{tpu_custom_call.1} parent=35 // pred_region
          %s670 = sand.u32 %s93, 1
          %s671 = scalar_lea.sflag [#allocation3], %s670
          %s672 = sand.u32 %s93, 1
          %s673 = smul.addr %s672, 8
          %s674 = scalar_lea.vmem [#allocation2], %s673
          %675 = dma.done %s671, 128
        $region40: #{tpu_custom_call.1} parent=35 // pred_fallthru
          _
      $region36: #{tpu_custom_call.1} parent=5 // pred_fallthru
        _
    $region6: #{tpu_custom_call.1} parent=1 // loop_footer
      %s15 = sadd.s32 1, %s11
    $region7: #{tpu_custom_call.1} parent=1 // loop_footer_branch
      %10 = sbr.rel target = $region3
    $region8: #{tpu_custom_call.1} parent=1 // loop_exit
      _
    %676 = vsyncpa [#allocation3], 1
    %s677 = scalar_lea.sflag [#allocation3], 1
    %678 = vsyncpa %s677, 1

</llo_original>
